<compile_context>
chip_gen: v6e
topology: v6e:2x2x1
jax: 0.10.0
libtpu: 0.0.40
codegen_flags: <defaults>
</compile_context>

<pallas_src>
import jax
import jax.numpy as jnp
from jax.experimental import pallas as pl
from jax.experimental.pallas import tpu as pltpu


def _locked_dropout_kernel(mask_ref, x_ref, o_ref):
    # mask_ref: (1, BH)   -- same block for every grid step (stays resident)
    # x_ref/o_ref: (TILE_T, BH) tile of the flattened activations
    o_ref[...] = x_ref[...] * mask_ref[...]


def _choose_tile_t(T, BH, itemsize, target_bytes=2 << 20):
    """Rows per tile so one buffer is ~target_bytes (keeps 2x-in + 2x-out
    double buffers well under the 16 MiB v5e scoped-VMEM default and far
    under v7x's 32 MiB)."""
    rows = max(1, target_bytes // max(1, BH * itemsize))
    if rows >= T:
        return T
    # Sublane granularity: multiple of 8 (block dim must be /8 or == full T).
    rows = max(8, (rows // 8) * 8)
    return min(rows, T)


def locked_dropout(x, key, dropout=0.5, training=True):
    """Pallas implementation of LockedDropout.forward.

    x:   (T, B, H) array (same axis convention as the PyTorch module).
    key: jax.random.PRNGKey used to sample the (1, B, H) mask.
    """
    if (not training) or dropout == 0.0:
        return x
    if dropout >= 1.0:
        # keep_prob == 0 would give a 0/0 mask (NaN in PyTorch); drop everything.
        return jnp.zeros_like(x)

    keep_prob = 1.0 - float(dropout)
    T, B, H = x.shape
    BH = B * H

    # Lane-dense 2D view; pure layout plumbing (no copy for contiguous x).
    x2 = x.reshape(T, BH)

    # Sample the locked mask once, already scaled and in x's dtype.
    # TODO(synk): mask sampling uses jax.random (host/XLA) rather than the
    # in-kernel TPU PRNG (pltpu.prng_*), which is unsupported in interpret mode.
    keep = jax.random.bernoulli(key, p=keep_prob, shape=(1, BH))
    mask = keep.astype(x.dtype) * jnp.asarray(1.0 / keep_prob, dtype=x.dtype)

    tile_t = _choose_tile_t(T, BH, jnp.dtype(x.dtype).itemsize)
    grid = (pl.cdiv(T, tile_t),)

    out2 = pl.pallas_call(
        _locked_dropout_kernel,
        out_shape=jax.ShapeDtypeStruct((T, BH), x.dtype),
        grid=grid,
        in_specs=[
            pl.BlockSpec((1, BH), lambda t: (0, 0)),        # mask: resident
            pl.BlockSpec((tile_t, BH), lambda t: (t, 0)),   # x tile
        ],
        out_specs=pl.BlockSpec((tile_t, BH), lambda t: (t, 0)),
        compiler_params=pltpu.CompilerParams(
            dimension_semantics=("parallel",),
        ),
    )(mask, x2)

    return out2.reshape(T, B, H)


if __name__ == "__main__":
    # Small, (8,128)-friendly shapes: seq=8, batch=8, hidden=128 (B*H = 1024).
    T, B, H = 8, 8, 128
    key = jax.random.PRNGKey(0)
    xkey, mkey = jax.random.split(key)
    x = jax.random.normal(xkey, (T, B, H), dtype=jnp.float32)

    dropout = 0.5
    keep_prob = 1.0 - dropout

    y = locked_dropout(x, mkey, dropout=dropout, training=True)
    y = jax.block_until_ready(y)

    # Sanity checks of LockedDropout semantics:
    #  - every output element is either 0 or x / keep_prob
    #  - the mask is identical across the time axis ("locked")
    ratio = jnp.where(x != 0, y / x, 0.0)
    ok_values = bool(
        jnp.all(
            (jnp.abs(ratio) < 1e-6)
            | (jnp.abs(ratio - 1.0 / keep_prob) < 1e-4)
        )
    )
    mask0 = jnp.where(x[0] != 0, y[0] / x[0], 0.0)
    locked = bool(jnp.all(jnp.abs(ratio - mask0[None]) < 1e-4))

    # Eval-mode passthrough check.
    y_eval = locked_dropout(x, mkey, dropout=dropout, training=False)
    passthrough = bool(jnp.all(y_eval == x))

    assert ok_values and locked and passthrough
    print("KERNEL_OK")
</pallas_src>

<mosaic_0001>
module attributes {stable_mosaic.version = 11 : i64} {
  func.func @_locked_dropout_kernel(%arg0: i32, %arg1: memref<1x1024xf32, #tpu.memory_space<vmem>>, %arg2: memref<8x1024xf32, #tpu.memory_space<vmem>>, %arg3: memref<8x1024xf32, #tpu.memory_space<vmem>>) attributes {dimension_semantics = [#tpu.dimension_semantics<parallel>], iteration_bounds = array<i64: 1>, scalar_prefetch = 0 : i64, scratch_operands = 0 : i64, tpu.core_type = #tpu.core_type<tc>, window_params = [{pipeline_mode = #tpu.pipeline_mode<synchronous>, transform_indices = @transform_0, window_bounds = array<i64: 1, 1024>}, {transform_indices = @transform_1, window_bounds = array<i64: 8, 1024>}, {transform_indices = @transform_2, window_bounds = array<i64: 8, 1024>}]} {
    %c0 = arith.constant 0 : index
    %c0_0 = arith.constant 0 : index
    %0 = vector.load %arg2[%c0, %c0_0] : memref<8x1024xf32, #tpu.memory_space<vmem>>, vector<8x1024xf32>
    %c0_1 = arith.constant 0 : index
    %c0_2 = arith.constant 0 : index
    %1 = vector.load %arg1[%c0_1, %c0_2] : memref<1x1024xf32, #tpu.memory_space<vmem>>, vector<1x1024xf32>
    %2 = vector.broadcast %1 : vector<1x1024xf32> to vector<8x1024xf32>
    %3 = arith.mulf %0, %2 : vector<8x1024xf32>
    %c0_3 = arith.constant 0 : index
    %c0_4 = arith.constant 0 : index
    %4 = vector.load %arg3[%c0_3, %c0_4] : memref<8x1024xf32, #tpu.memory_space<vmem>>, vector<8x1024xf32>
    tpu.vector_store %arg3[%c0_3, %c0_4], %3 {strides = array<i32>} : memref<8x1024xf32, #tpu.memory_space<vmem>>, vector<8x1024xf32>,
    return
  }
  func.func @transform_0(%arg0: i32) -> (i32, i32) {
    %c0_i32 = arith.constant 0 : i32
    %c0_i32_0 = arith.constant 0 : i32
    %c0_i32_1 = arith.constant 0 : i32
    return %c0_i32, %c0_i32_0 : i32, i32
  }
  func.func @transform_1(%arg0: i32) -> (i32, i32) {
    %c0_i32 = arith.constant 0 : i32
    %c0_i32_0 = arith.constant 0 : i32
    return %arg0, %c0_i32 : i32, i32
  }
  func.func @transform_2(%arg0: i32) -> (i32, i32) {
    %c0_i32 = arith.constant 0 : i32
    %c0_i32_0 = arith.constant 0 : i32
    return %arg0, %c0_i32 : i32, i32
  }
}

</mosaic_0001>

<llo_original>
// kernel: tpu_custom_call.1
$region0: #{tpu_custom_call.1}
  #allocation0 [shape = 'u32[]', space=smem, size = 0x4, offset = 0x4, fixed_abs, tag = 'smem constant byte address 0x4 - core index']
  #allocation1 [shape = 'u32[144,128]{1,0:T(1,128)}', space=vmem, size = 0x12000, scoped, tag = 'internal scratch']
  %s0 = inlined_call_operand.hbm [shape: f32[1,1024], index: 0, kind: input, shape index: {}]
  %s1 = inlined_call_operand.hbm [shape: f32[8,1024], index: 1, kind: input, shape index: {}]
  %s2 = inlined_call_operand.hbm [shape: f32[8,1024], index: 2, kind: output, shape index: {}]
  %s3 = sld [smem:[#allocation0]]
  $region26: #{tpu_custom_call.1} parent=0
    _
  %s5 = ssub.s32 1, %s3
  %s6 = scalar_select 0, %s5, %s3
  $region1: #{tpu_custom_call.1} parent=0
    #allocation2 [shape = 'u8[4096]{0}', space=vmem, size = 0x1000, scoped, tag = 'input window, operand 0, single buffered']
    #allocation3 [shape = 's32[1]{0}', space=sflag, size = 0x4, scoped, tag = 'scoped memory for tpu_custom_call.1']
    #allocation4 [shape = 's32[1]{0}', space=sflag, size = 0x4, scoped, tag = 'scoped memory for tpu_custom_call.1']
    #allocation5 [shape = 'u8[32768]{0}', space=vmem, size = 0x8000, scoped, tag = 'input window, operand 1, single buffered']
    #allocation6 [shape = 's32[1]{0}', space=sflag, size = 0x4, scoped, tag = 'scoped memory for tpu_custom_call.1']
    #allocation7 [shape = 'u8[32768]{0}', space=vmem, size = 0x8000, scoped, tag = 'output window, operand 0, single buffered']
    %7 = vsyncpa [#allocation3], 0
    %8 = vsyncpa [#allocation6], 0
    %9 = vsyncpa [#allocation4], 0
    // Predicated region
    $region2: #{tpu_custom_call.1} parent=1 // pred_check
      _
    $region3: #{tpu_custom_call.1} parent=1 // pred_check_branch
      %11 = sbr.rel (0) target = $region5
    $region4: #{tpu_custom_call.1} parent=1 // pred_region
      %s13 = ssub.s32 128, 128
      %14 = vsyncadd [#allocation3], %s13
      %s16 = sshll.u32 [#allocation2], 4
      %s17 = int_to_ptr.vmem [resolvable:$true] %s16
      %19 = dma.hbm_to_vmem [thread:$0]  %s0, 128, %s17, [#allocation3]
    $region5: #{tpu_custom_call.1} parent=1 // pred_fallthru
      _
    // Predicated region
    $region6: #{tpu_custom_call.1} parent=1 // pred_check
      _
    $region7: #{tpu_custom_call.1} parent=1 // pred_check_branch
      %21 = sbr.rel (0) target = $region9
    $region8: #{tpu_custom_call.1} parent=1 // pred_region
      %s23 = ssub.s32 1024, 1024
      %24 = vsyncadd [#allocation6], %s23
      %s26 = sshll.u32 [#allocation5], 4
      %s27 = int_to_ptr.vmem [resolvable:$true] %s26
      %29 = dma.hbm_to_vmem [thread:$0]  %s1, 1024, %s27, [#allocation6]
    $region9: #{tpu_custom_call.1} parent=1 // pred_fallthru
      _
    // Predicated region
    $region10: #{tpu_custom_call.1} parent=1 // pred_check
      _
    $region11: #{tpu_custom_call.1} parent=1 // pred_check_branch
      %31 = sbr.rel (0) target = $region13
    $region12: #{tpu_custom_call.1} parent=1 // pred_region
      %32 = dma.done [#allocation3], 128
    $region13: #{tpu_custom_call.1} parent=1 // pred_fallthru
      _
    // Predicated region
    $region14: #{tpu_custom_call.1} parent=1 // pred_check
      _
    $region15: #{tpu_custom_call.1} parent=1 // pred_check_branch
      %34 = sbr.rel (0) target = $region17
    $region16: #{tpu_custom_call.1} parent=1 // pred_region
      %35 = dma.done [#allocation6], 1024
    $region17: #{tpu_custom_call.1} parent=1 // pred_fallthru
      _
    %v36 = vld [vmem:[#allocation5] sm:$0xff]
    %v37 = vld [vmem:[#allocation5 + $0x8] sm:$0xff]
    %v38 = vld [vmem:[#allocation5 + $0x10] sm:$0xff]
    %v39 = vld [vmem:[#allocation5 + $0x18] sm:$0xff]
    %v40 = vld [vmem:[#allocation5 + $0x20] sm:$0xff]
    %v41 = vld [vmem:[#allocation5 + $0x28] sm:$0xff]
    %v42 = vld [vmem:[#allocation5 + $0x30] sm:$0xff]
    %v43 = vld [vmem:[#allocation5 + $0x38] sm:$0xff]
    %v44 = vld [vmem:[#allocation2] sm:$0xff]
    %v46 = vlaneseq
    %v47 = vshrl.u32 %v46, 7
    %v48 = vsub.s32 0, %v47
    %v49 = vrot.slane %v44, %v48
    %v50 = vlaneseq
    %v51 = vshrl.u32 %v50, 7
    %v52 = vsub.s32 1, %v51
    %v53 = vrot.slane %v44, %v52
    %v54 = vlaneseq
    %v55 = vshrl.u32 %v54, 7
    %v56 = vsub.s32 2, %v55
    %v57 = vrot.slane %v44, %v56
    %v58 = vlaneseq
    %v59 = vshrl.u32 %v58, 7
    %v60 = vsub.s32 3, %v59
    %v61 = vrot.slane %v44, %v60
    %v62 = vlaneseq
    %v63 = vshrl.u32 %v62, 7
    %v64 = vsub.s32 4, %v63
    %v65 = vrot.slane %v44, %v64
    %v66 = vlaneseq
    %v67 = vshrl.u32 %v66, 7
    %v68 = vsub.s32 5, %v67
    %v69 = vrot.slane %v44, %v68
    %v70 = vlaneseq
    %v71 = vshrl.u32 %v70, 7
    %v72 = vsub.s32 6, %v71
    %v73 = vrot.slane %v44, %v72
    %v74 = vlaneseq
    %v75 = vshrl.u32 %v74, 7
    %v76 = vsub.s32 7, %v75
    %v77 = vrot.slane %v44, %v76
    %v86 = vmul.f32 %v36, %v49
    %v87 = vmul.f32 %v37, %v53
    %v88 = vmul.f32 %v38, %v57
    %v89 = vmul.f32 %v39, %v61
    %v90 = vmul.f32 %v40, %v65
    %v91 = vmul.f32 %v41, %v69
    %v92 = vmul.f32 %v42, %v73
    %v93 = vmul.f32 %v43, %v77
    %94 = vst [vmem:[#allocation7] sm:$0xff] %v86
    %95 = vst [vmem:[#allocation7 + $0x8] sm:$0xff] %v87
    %96 = vst [vmem:[#allocation7 + $0x10] sm:$0xff] %v88
    %97 = vst [vmem:[#allocation7 + $0x18] sm:$0xff] %v89
    %98 = vst [vmem:[#allocation7 + $0x20] sm:$0xff] %v90
    %99 = vst [vmem:[#allocation7 + $0x28] sm:$0xff] %v91
    %100 = vst [vmem:[#allocation7 + $0x30] sm:$0xff] %v92
    %101 = vst [vmem:[#allocation7 + $0x38] sm:$0xff] %v93
    // Predicated region
    $region18: #{tpu_custom_call.1} parent=1 // pred_check
      _
    $region19: #{tpu_custom_call.1} parent=1 // pred_check_branch
      %103 = sbr.rel (0) target = $region21
    $region20: #{tpu_custom_call.1} parent=1 // pred_region
      %s105 = ssub.s32 1024, 1024
      %106 = vsyncadd [#allocation4], %s105
      %s108 = sshll.u32 [#allocation7], 4
      %s109 = int_to_ptr.vmem [resolvable:$true] %s108
      %111 = dma.vmem_to_hbm [thread:$0]  %s109, 1024, %s2, [#allocation4]
    $region21: #{tpu_custom_call.1} parent=1 // pred_fallthru
      _
    // Predicated region
    $region22: #{tpu_custom_call.1} parent=1 // pred_check
      _
    $region23: #{tpu_custom_call.1} parent=1 // pred_check_branch
      %113 = sbr.rel (0) target = $region25
    $region24: #{tpu_custom_call.1} parent=1 // pred_region
      %114 = dma.done [#allocation4], 1024
    $region25: #{tpu_custom_call.1} parent=1 // pred_fallthru
      _
    %115 = vsyncpa [#allocation3], 1
    %116 = vsyncpa [#allocation6], 1
    %117 = vsyncpa [#allocation4], 1

</llo_original>
